<compile_context>
chip_gen: v6e
topology: v6e:2x2x1
jax: 0.10.0
libtpu: 0.0.40
codegen_flags: <defaults>
</compile_context>

<pallas_src>
import functools
import numpy as np
import jax
import jax.numpy as jnp
from jax.experimental import pallas as pl
from jax.experimental.pallas import tpu as pltpu

# ---- static problem sizes (must satisfy 12 * H * (W - 4) == 288 for the FC layer) ----
H, W = 2, 16
W4 = W - 4
NUM_CLASSES = 12
NPAD = 128                  # lane-dense padded class axis
CH = (1, 2, 4, 8, 12)       # channel counts per stage
assert 12 * H * W4 == 288

BATCH = 8                   # example batch size (free dimension of the module)
BATCH_BLOCK = 4             # batch rows per grid step -> H*BATCH_BLOCK = 8 sublanes


# --------------------------------------------------------------------------------------
# Kernel
# --------------------------------------------------------------------------------------
def predictor_kernel(x_ref,
                     m1, s1, t1, m2, s2, t2, m3, s3, t3, m4, s4, t4,
                     wfc_ref, bfc_ref, out_ref):
    # x_ref block: (1, H*BB, W); activation slab rows ordered r = h*BB + b_local.

    def conv_bn_relu(a, m_ref, s_ref, t_ref):
        # one banded matmul per layer: (H*BB, Cin*W) @ (Cin*W, Cout*W)
        y = jnp.dot(a, m_ref[...], preferred_element_type=jnp.float32)
        # fused conv-bias + BatchNorm(eval) as pre-broadcast per-lane scale/shift
        return jnp.maximum(y * s_ref[...] + t_ref[...], 0.0)

    a = x_ref[0]                        # (H*BB, W)
    a = conv_bn_relu(a, m1, s1, t1)     # (H*BB,  2*W)
    a = conv_bn_relu(a, m2, s2, t2)     # (H*BB,  4*W)
    a = conv_bn_relu(a, m3, s3, t3)     # (H*BB,  8*W)  valid cols: w in [1, 14]
    a = conv_bn_relu(a, m4, s4, t4)     # (H*BB, 12*W)  valid cols: w in [2, 13]

    bb = a.shape[0] // H
    # FC collapsed to two lane-dense matmuls (one per h row-block); class axis padded
    # to 128 lanes (zero weights / -1e30 bias in the padding).
    logits = (bfc_ref[...]
              + jnp.dot(a[:bb, :], wfc_ref[0], preferred_element_type=jnp.float32)
              + jnp.dot(a[bb:, :], wfc_ref[1], preferred_element_type=jnp.float32))

    # lane-dense softmax; padded lanes carry ~-1e30 -> probability 0
    m = jnp.max(logits, axis=-1, keepdims=True)
    e = jnp.exp(logits - m)
    denom = jnp.sum(e, axis=-1, keepdims=True)
    out_ref[0] = e * pl.reciprocal(denom, approx=True)


# --------------------------------------------------------------------------------------
# Wrapper-side parameter packing (layout plumbing, no per-element kernel work)
# --------------------------------------------------------------------------------------
def _band_selector():
    # T[k, wi, wo] = 1 iff wi == wo + k - 1  (centered 3-tap band, zero pad implicit)
    t = np.zeros((3, W, W), np.float32)
    for k in range(3):
        for wo in range(W):
            wi = wo + k - 1
            if 0 <= wi < W:
                t[k, wi, wo] = 1.0
    return t


_BAND = _band_selector()


def _conv_matrix(w):
    # w: (cout, cin, 1, 3)  ->  banded matrix (cin*W, cout*W)
    cout, cin = w.shape[0], w.shape[1]
    m = jnp.einsum('oik,kab->iaob', w[:, :, 0, :].astype(jnp.float32), _BAND)
    return m.reshape(cin * W, cout * W)


def _bn_vectors(scale, shift, conv_bias, cout):
    # y = (conv + bias) * scale + shift  ==  conv * scale + (bias*scale + shift)
    sv = jnp.repeat(scale.astype(jnp.float32), W).reshape(1, cout * W)
    tv = jnp.repeat((conv_bias * scale + shift).astype(jnp.float32), W).reshape(1, cout * W)
    return sv, tv


def _fc_weights(wfc, bfc):
    # torch flatten order is (c, h, j): Wfc[cls, c*H*W4 + h*W4 + j]
    wr = wfc.reshape(NUM_CLASSES, CH[4], H, W4).astype(jnp.float32)
    wr = jnp.transpose(wr, (2, 1, 3, 0))                      # (h, c, j, cls)
    wh = jnp.zeros((H, CH[4], W, NPAD), jnp.float32)
    wh = wh.at[:, :, 2:2 + W4, :NUM_CLASSES].set(wr)          # valid cols at w = 2 + j
    wh = wh.reshape(H, CH[4] * W, NPAD)                       # (H, 192, 128)
    bpad = jnp.full((1, NPAD), -1e30, jnp.float32)
    bpad = bpad.at[0, :NUM_CLASSES].set(bfc.astype(jnp.float32))
    return wh, bpad


def predictor_forward(x_nchw, params, batch_block=BATCH_BLOCK):
    (w1, b1, s1, t1, w2, b2, s2, t2,
     w3, b3, s3, t3, w4, b4, s4, t4, wfc, bfc) = params

    btot = x_nchw.shape[0]
    bb = min(batch_block, btot)
    assert btot % bb == 0
    nb = btot // bb

    # rows inside a batch block ordered r = h*bb + b_local
    x1 = x_nchw[:, 0, :, :].astype(jnp.float32)                       # (B, H, W)
    x_k = x1.reshape(nb, bb, H, W).transpose(0, 2, 1, 3).reshape(nb, H * bb, W)

    m1 = _conv_matrix(w1); sv1, tv1 = _bn_vectors(s1, t1, b1, CH[1])
    m2 = _conv_matrix(w2); sv2, tv2 = _bn_vectors(s2, t2, b2, CH[2])
    m3 = _conv_matrix(w3); sv3, tv3 = _bn_vectors(s3, t3, b3, CH[3])
    m4 = _conv_matrix(w4); sv4, tv4 = _bn_vectors(s4, t4, b4, CH[4])
    wh, bpad = _fc_weights(wfc, bfc)

    weights = (m1, sv1, tv1, m2, sv2, tv2, m3, sv3, tv3, m4, sv4, tv4, wh, bpad)

    def full_spec(arr):
        nd = arr.ndim
        return pl.BlockSpec(arr.shape, lambda i, _n=nd: (0,) * _n)

    out = pl.pallas_call(
        predictor_kernel,
        out_shape=jax.ShapeDtypeStruct((nb, bb, NPAD), jnp.float32),
        grid=(nb,),
        in_specs=[pl.BlockSpec((1, H * bb, W), lambda i: (i, 0, 0))]
                 + [full_spec(wgt) for wgt in weights],
        out_specs=pl.BlockSpec((1, bb, NPAD), lambda i: (i, 0, 0)),
        compiler_params=pltpu.CompilerParams(
            dimension_semantics=("parallel",)),       # megacore sharding on v7x
    )(x_k, *weights)

    # lane-dense (bb, 128) kernel output; slice the real 12 classes outside.
    return out.reshape(btot, NPAD)[:, :NUM_CLASSES]


# --------------------------------------------------------------------------------------
# Deterministic parameter init (synthetic, mimics the module's __init__ shapes)
# --------------------------------------------------------------------------------------
def init_params(key):
    ks = list(jax.random.split(key, 26))
    pop = lambda: ks.pop(0)
    eps = 1e-5

    def conv_w(cout, cin):
        fan_in = cin * 3
        return jax.random.normal(pop(), (cout, cin, 1, 3), jnp.float32) / np.sqrt(fan_in)

    def conv_b(c):
        return 0.1 * jax.random.normal(pop(), (c,), jnp.float32)

    def bn(c):
        gamma = 1.0 + 0.1 * jax.random.normal(pop(), (c,), jnp.float32)
        beta = 0.1 * jax.random.normal(pop(), (c,), jnp.float32)
        mean = 0.1 * jax.random.normal(pop(), (c,), jnp.float32)
        var = jax.random.uniform(pop(), (c,), jnp.float32, minval=0.5, maxval=1.5)
        scale = gamma / jnp.sqrt(var + eps)
        shift = beta - mean * scale
        return scale, shift

    w1, b1 = conv_w(2, 1), conv_b(2)
    s1, t1 = bn(2)
    w2, b2 = conv_w(4, 2), conv_b(4)
    s2, t2 = bn(4)
    w3, b3 = conv_w(8, 4), conv_b(8)
    s3, t3 = bn(8)
    w4, b4 = conv_w(12, 8), conv_b(12)
    s4, t4 = bn(12)
    wfc = jax.random.normal(pop(), (NUM_CLASSES, 288), jnp.float32) / np.sqrt(288.0)
    bfc = 0.1 * jax.random.normal(pop(), (NUM_CLASSES,), jnp.float32)
    return (w1, b1, s1, t1, w2, b2, s2, t2,
            w3, b3, s3, t3, w4, b4, s4, t4, wfc, bfc)


# --------------------------------------------------------------------------------------
# Plain-JAX reference (sanity check of the Pallas kernel)
# --------------------------------------------------------------------------------------
def reference_forward(x, params):
    (w1, b1, s1, t1, w2, b2, s2, t2,
     w3, b3, s3, t3, w4, b4, s4, t4, wfc, bfc) = params

    def conv(a, w, b, pad):
        out = jax.lax.conv_general_dilated(
            a, w, window_strides=(1, 1), padding=[(0, 0), (pad, pad)],
            dimension_numbers=('NCHW', 'OIHW', 'NCHW'))
        return out + b.reshape(1, -1, 1, 1)

    def bnrelu(a, s, t):
        return jnp.maximum(a * s.reshape(1, -1, 1, 1) + t.reshape(1, -1, 1, 1), 0.0)

    a = bnrelu(conv(x, w1, b1, 1), s1, t1)
    a = bnrelu(conv(a, w2, b2, 1), s2, t2)
    a = bnrelu(conv(a, w3, b3, 0), s3, t3)
    a = bnrelu(conv(a, w4, b4, 0), s4, t4)
    logits = a.reshape(a.shape[0], -1) @ wfc.T + bfc
    return jax.nn.softmax(logits, axis=1)


if __name__ == "__main__":
    key = jax.random.PRNGKey(0)
    k_param, k_x = jax.random.split(key)
    params = init_params(k_param)
    x = jax.random.normal(k_x, (BATCH, 1, H, W), jnp.float32)   # NCHW, like torch

    fwd = jax.jit(functools.partial(predictor_forward, batch_block=BATCH_BLOCK))
    out = jax.block_until_ready(fwd(x, params))

    ref = jax.block_until_ready(reference_forward(x, params))
    assert out.shape == (BATCH, NUM_CLASSES)
    err = np.max(np.abs(np.asarray(out) - np.asarray(ref)))
    # small slack for the approximate EUP reciprocal in the softmax
    assert np.allclose(np.asarray(out), np.asarray(ref), atol=5e-3, rtol=5e-3), err

    print("KERNEL_OK")
</pallas_src>

<mosaic_0001>
module attributes {stable_mosaic.version = 11 : i64} {
  func.func @predictor_kernel(%arg0: i32, %arg1: memref<1x8x16xf32, #tpu.memory_space<vmem>>, %arg2: memref<16x32xf32, #tpu.memory_space<vmem>>, %arg3: memref<1x32xf32, #tpu.memory_space<vmem>>, %arg4: memref<1x32xf32, #tpu.memory_space<vmem>>, %arg5: memref<32x64xf32, #tpu.memory_space<vmem>>, %arg6: memref<1x64xf32, #tpu.memory_space<vmem>>, %arg7: memref<1x64xf32, #tpu.memory_space<vmem>>, %arg8: memref<64x128xf32, #tpu.memory_space<vmem>>, %arg9: memref<1x128xf32, #tpu.memory_space<vmem>>, %arg10: memref<1x128xf32, #tpu.memory_space<vmem>>, %arg11: memref<128x192xf32, #tpu.memory_space<vmem>>, %arg12: memref<1x192xf32, #tpu.memory_space<vmem>>, %arg13: memref<1x192xf32, #tpu.memory_space<vmem>>, %arg14: memref<2x192x128xf32, #tpu.memory_space<vmem>>, %arg15: memref<1x128xf32, #tpu.memory_space<vmem>>, %arg16: memref<1x4x128xf32, #tpu.memory_space<vmem>>) attributes {dimension_semantics = [#tpu.dimension_semantics<parallel>], iteration_bounds = array<i64: 2>, scalar_prefetch = 0 : i64, scratch_operands = 0 : i64, tpu.core_type = #tpu.core_type<tc>, window_params = [{transform_indices = @transform_0, window_bounds = array<i64: 1, 8, 16>}, {pipeline_mode = #tpu.pipeline_mode<synchronous>, transform_indices = @transform_1, window_bounds = array<i64: 16, 32>}, {pipeline_mode = #tpu.pipeline_mode<synchronous>, transform_indices = @transform_2, window_bounds = array<i64: 1, 32>}, {pipeline_mode = #tpu.pipeline_mode<synchronous>, transform_indices = @transform_3, window_bounds = array<i64: 1, 32>}, {pipeline_mode = #tpu.pipeline_mode<synchronous>, transform_indices = @transform_4, window_bounds = array<i64: 32, 64>}, {pipeline_mode = #tpu.pipeline_mode<synchronous>, transform_indices = @transform_5, window_bounds = array<i64: 1, 64>}, {pipeline_mode = #tpu.pipeline_mode<synchronous>, transform_indices = @transform_6, window_bounds = array<i64: 1, 64>}, {pipeline_mode = #tpu.pipeline_mode<synchronous>, transform_indices = @transform_7, window_bounds = array<i64: 64, 128>}, {pipeline_mode = #tpu.pipeline_mode<synchronous>, transform_indices = @transform_8, window_bounds = array<i64: 1, 128>}, {pipeline_mode = #tpu.pipeline_mode<synchronous>, transform_indices = @transform_9, window_bounds = array<i64: 1, 128>}, {pipeline_mode = #tpu.pipeline_mode<synchronous>, transform_indices = @transform_10, window_bounds = array<i64: 128, 192>}, {pipeline_mode = #tpu.pipeline_mode<synchronous>, transform_indices = @transform_11, window_bounds = array<i64: 1, 192>}, {pipeline_mode = #tpu.pipeline_mode<synchronous>, transform_indices = @transform_12, window_bounds = array<i64: 1, 192>}, {pipeline_mode = #tpu.pipeline_mode<synchronous>, transform_indices = @transform_13, window_bounds = array<i64: 2, 192, 128>}, {pipeline_mode = #tpu.pipeline_mode<synchronous>, transform_indices = @transform_14, window_bounds = array<i64: 1, 128>}, {transform_indices = @transform_15, window_bounds = array<i64: 1, 4, 128>}]} {
    %c0 = arith.constant 0 : index
    %c0_0 = arith.constant 0 : index
    %c0_1 = arith.constant 0 : index
    %0 = vector.load %arg1[%c0, %c0_0, %c0_1] : memref<1x8x16xf32, #tpu.memory_space<vmem>>, vector<1x8x16xf32>
    %1 = vector.shape_cast %0 : vector<1x8x16xf32> to vector<8x16xf32>
    %c0_2 = arith.constant 0 : index
    %c0_3 = arith.constant 0 : index
    %2 = vector.load %arg2[%c0_2, %c0_3] : memref<16x32xf32, #tpu.memory_space<vmem>>, vector<16x32xf32>
    %cst = arith.constant dense<0.000000e+00> : vector<8x32xf32>
    %3 = tpu.matmul %1, %2, %cst {dimension_numbers = #tpu.dot_dimension_numbers<[1], [0], [0], [1], [0, 0, 1, 1], [], []>} : vector<8x16xf32>, vector<16x32xf32>, vector<8x32xf32> -> vector<8x32xf32>
    %c0_4 = arith.constant 0 : index
    %c0_5 = arith.constant 0 : index
    %4 = vector.load %arg3[%c0_4, %c0_5] : memref<1x32xf32, #tpu.memory_space<vmem>>, vector<1x32xf32>
    %5 = vector.broadcast %4 : vector<1x32xf32> to vector<8x32xf32>
    %6 = arith.mulf %3, %5 : vector<8x32xf32>
    %c0_6 = arith.constant 0 : index
    %c0_7 = arith.constant 0 : index
    %7 = vector.load %arg4[%c0_6, %c0_7] : memref<1x32xf32, #tpu.memory_space<vmem>>, vector<1x32xf32>
    %8 = vector.broadcast %7 : vector<1x32xf32> to vector<8x32xf32>
    %9 = arith.addf %6, %8 : vector<8x32xf32>
    %cst_8 = arith.constant 0.000000e+00 : f32
    %10 = vector.broadcast %cst_8 : f32 to vector<8x32xf32>
    %11 = arith.maximumf %9, %10 : vector<8x32xf32>
    %c0_9 = arith.constant 0 : index
    %c0_10 = arith.constant 0 : index
    %12 = vector.load %arg5[%c0_9, %c0_10] : memref<32x64xf32, #tpu.memory_space<vmem>>, vector<32x64xf32>
    %cst_11 = arith.constant dense<0.000000e+00> : vector<8x64xf32>
    %13 = tpu.matmul %11, %12, %cst_11 {dimension_numbers = #tpu.dot_dimension_numbers<[1], [0], [0], [1], [0, 0, 1, 1], [], []>} : vector<8x32xf32>, vector<32x64xf32>, vector<8x64xf32> -> vector<8x64xf32>
    %c0_12 = arith.constant 0 : index
    %c0_13 = arith.constant 0 : index
    %14 = vector.load %arg6[%c0_12, %c0_13] : memref<1x64xf32, #tpu.memory_space<vmem>>, vector<1x64xf32>
    %15 = vector.broadcast %14 : vector<1x64xf32> to vector<8x64xf32>
    %16 = arith.mulf %13, %15 : vector<8x64xf32>
    %c0_14 = arith.constant 0 : index
    %c0_15 = arith.constant 0 : index
    %17 = vector.load %arg7[%c0_14, %c0_15] : memref<1x64xf32, #tpu.memory_space<vmem>>, vector<1x64xf32>
    %18 = vector.broadcast %17 : vector<1x64xf32> to vector<8x64xf32>
    %19 = arith.addf %16, %18 : vector<8x64xf32>
    %cst_16 = arith.constant 0.000000e+00 : f32
    %20 = vector.broadcast %cst_16 : f32 to vector<8x64xf32>
    %21 = arith.maximumf %19, %20 : vector<8x64xf32>
    %c0_17 = arith.constant 0 : index
    %c0_18 = arith.constant 0 : index
    %22 = vector.load %arg8[%c0_17, %c0_18] : memref<64x128xf32, #tpu.memory_space<vmem>>, vector<64x128xf32>
    %cst_19 = arith.constant dense<0.000000e+00> : vector<8x128xf32>
    %23 = tpu.matmul %21, %22, %cst_19 {dimension_numbers = #tpu.dot_dimension_numbers<[1], [0], [0], [1], [0, 0, 1, 1], [], []>} : vector<8x64xf32>, vector<64x128xf32>, vector<8x128xf32> -> vector<8x128xf32>
    %c0_20 = arith.constant 0 : index
    %c0_21 = arith.constant 0 : index
    %24 = vector.load %arg9[%c0_20, %c0_21] : memref<1x128xf32, #tpu.memory_space<vmem>>, vector<1x128xf32>
    %25 = vector.broadcast %24 : vector<1x128xf32> to vector<8x128xf32>
    %26 = arith.mulf %23, %25 : vector<8x128xf32>
    %c0_22 = arith.constant 0 : index
    %c0_23 = arith.constant 0 : index
    %27 = vector.load %arg10[%c0_22, %c0_23] : memref<1x128xf32, #tpu.memory_space<vmem>>, vector<1x128xf32>
    %28 = vector.broadcast %27 : vector<1x128xf32> to vector<8x128xf32>
    %29 = arith.addf %26, %28 : vector<8x128xf32>
    %cst_24 = arith.constant 0.000000e+00 : f32
    %30 = vector.broadcast %cst_24 : f32 to vector<8x128xf32>
    %31 = arith.maximumf %29, %30 : vector<8x128xf32>
    %c0_25 = arith.constant 0 : index
    %c0_26 = arith.constant 0 : index
    %32 = vector.load %arg11[%c0_25, %c0_26] : memref<128x192xf32, #tpu.memory_space<vmem>>, vector<128x192xf32>
    %cst_27 = arith.constant dense<0.000000e+00> : vector<8x192xf32>
    %33 = tpu.matmul %31, %32, %cst_27 {dimension_numbers = #tpu.dot_dimension_numbers<[1], [0], [0], [1], [0, 0, 1, 1], [], []>} : vector<8x128xf32>, vector<128x192xf32>, vector<8x192xf32> -> vector<8x192xf32>
    %c0_28 = arith.constant 0 : index
    %c0_29 = arith.constant 0 : index
    %34 = vector.load %arg12[%c0_28, %c0_29] : memref<1x192xf32, #tpu.memory_space<vmem>>, vector<1x192xf32>
    %35 = vector.broadcast %34 : vector<1x192xf32> to vector<8x192xf32>
    %36 = arith.mulf %33, %35 : vector<8x192xf32>
    %c0_30 = arith.constant 0 : index
    %c0_31 = arith.constant 0 : index
    %37 = vector.load %arg13[%c0_30, %c0_31] : memref<1x192xf32, #tpu.memory_space<vmem>>, vector<1x192xf32>
    %38 = vector.broadcast %37 : vector<1x192xf32> to vector<8x192xf32>
    %39 = arith.addf %36, %38 : vector<8x192xf32>
    %cst_32 = arith.constant 0.000000e+00 : f32
    %40 = vector.broadcast %cst_32 : f32 to vector<8x192xf32>
    %41 = arith.maximumf %39, %40 : vector<8x192xf32>
    %c0_33 = arith.constant 0 : index
    %c0_34 = arith.constant 0 : index
    %42 = vector.load %arg15[%c0_33, %c0_34] : memref<1x128xf32, #tpu.memory_space<vmem>>, vector<1x128xf32>
    %43 = vector.extract_strided_slice %41 {offsets = [0, 0], sizes = [4, 192], strides = [1, 1]} : vector<8x192xf32> to vector<4x192xf32>
    %c0_35 = arith.constant 0 : index
    %c0_36 = arith.constant 0 : index
    %c0_37 = arith.constant 0 : index
    %44 = vector.load %arg14[%c0_35, %c0_36, %c0_37] : memref<2x192x128xf32, #tpu.memory_space<vmem>>, vector<1x192x128xf32>
    %45 = vector.shape_cast %44 : vector<1x192x128xf32> to vector<192x128xf32>
    %cst_38 = arith.constant dense<0.000000e+00> : vector<4x128xf32>
    %46 = tpu.matmul %43, %45, %cst_38 {dimension_numbers = #tpu.dot_dimension_numbers<[1], [0], [0], [1], [0, 0, 1, 1], [], []>} : vector<4x192xf32>, vector<192x128xf32>, vector<4x128xf32> -> vector<4x128xf32>
    %47 = vector.broadcast %42 : vector<1x128xf32> to vector<4x128xf32>
    %48 = arith.addf %47, %46 : vector<4x128xf32>
    %49 = vector.extract_strided_slice %41 {offsets = [4, 0], sizes = [4, 192], strides = [1, 1]} : vector<8x192xf32> to vector<4x192xf32>
    %c1 = arith.constant 1 : index
    %c0_39 = arith.constant 0 : index
    %c0_40 = arith.constant 0 : index
    %50 = vector.load %arg14[%c1, %c0_39, %c0_40] : memref<2x192x128xf32, #tpu.memory_space<vmem>>, vector<1x192x128xf32>
    %51 = vector.shape_cast %50 : vector<1x192x128xf32> to vector<192x128xf32>
    %cst_41 = arith.constant dense<0.000000e+00> : vector<4x128xf32>
    %52 = tpu.matmul %49, %51, %cst_41 {dimension_numbers = #tpu.dot_dimension_numbers<[1], [0], [0], [1], [0, 0, 1, 1], [], []>} : vector<4x192xf32>, vector<192x128xf32>, vector<4x128xf32> -> vector<4x128xf32>
    %53 = arith.addf %48, %52 : vector<4x128xf32>
    %cst_42 = arith.constant dense<0xFF800000> : vector<4xf32>
    %54 = vector.multi_reduction <maximumf>, %53, %cst_42 [1] : vector<4x128xf32> to vector<4xf32>
    %55 = vector.shape_cast %54 : vector<4xf32> to vector<4x1xf32>
    %56 = vector.broadcast %55 : vector<4x1xf32> to vector<4x128xf32>
    %57 = arith.subf %53, %56 : vector<4x128xf32>
    %58 = math.exp %57 : vector<4x128xf32>
    %cst_43 = arith.constant dense<0.000000e+00> : vector<4xf32>
    %59 = vector.multi_reduction <add>, %58, %cst_43 [1] : vector<4x128xf32> to vector<4xf32>
    %60 = vector.shape_cast %59 : vector<4xf32> to vector<4x1xf32>
    %61 = tpu.reciprocal %60 {approx = true} : vector<4x1xf32> -> vector<4x1xf32>
    %62 = vector.broadcast %61 : vector<4x1xf32> to vector<4x128xf32>
    %63 = arith.mulf %58, %62 : vector<4x128xf32>
    %c0_44 = arith.constant 0 : index
    %c0_45 = arith.constant 0 : index
    %c0_46 = arith.constant 0 : index
    %64 = vector.load %arg16[%c0_44, %c0_45, %c0_46] : memref<1x4x128xf32, #tpu.memory_space<vmem>>, vector<1x4x128xf32>
    %65 = vector.shape_cast %64 : vector<1x4x128xf32> to vector<4x128xf32>
    %66 = vector.shape_cast %63 : vector<4x128xf32> to vector<1x4x128xf32>
    tpu.vector_store %arg16[%c0_44, %c0_45, %c0_46], %66 {strides = array<i32>} : memref<1x4x128xf32, #tpu.memory_space<vmem>>, vector<1x4x128xf32>,
    return
  }
  func.func @transform_0(%arg0: i32) -> (i32, i32, i32) {
    %c0_i32 = arith.constant 0 : i32
    %c0_i32_0 = arith.constant 0 : i32
    %c0_i32_1 = arith.constant 0 : i32
    return %arg0, %c0_i32, %c0_i32_0 : i32, i32, i32
  }
  func.func @transform_1(%arg0: i32) -> (i32, i32) {
    %c0_i32 = arith.constant 0 : i32
    %c0_i32_0 = arith.constant 0 : i32
    %c0_i32_1 = arith.constant 0 : i32
    return %c0_i32, %c0_i32_0 : i32, i32
  }
  func.func @transform_2(%arg0: i32) -> (i32, i32) {
    %c0_i32 = arith.constant 0 : i32
    %c0_i32_0 = arith.constant 0 : i32
    %c0_i32_1 = arith.constant 0 : i32
    return %c0_i32, %c0_i32_0 : i32, i32
  }
  func.func @transform_3(%arg0: i32) -> (i32, i32) {
    %c0_i32 = arith.constant 0 : i32
    %c0_i32_0 = arith.constant 0 : i32
    %c0_i32_1 = arith.constant 0 : i32
    return %c0_i32, %c0_i32_0 : i32, i32
  }
  func.func @transform_4(%arg0: i32) -> (i32, i32) {
    %c0_i32 = arith.constant 0 : i32
    %c0_i32_0 = arith.constant 0 : i32
    %c0_i32_1 = arith.constant 0 : i32
    return %c0_i32, %c0_i32_0 : i32, i32
  }
  func.func @transform_5(%arg0: i32) -> (i32, i32) {
    %c0_i32 = arith.constant 0 : i32
    %c0_i32_0 = arith.constant 0 : i32
    %c0_i32_1 = arith.constant 0 : i32
    return %c0_i32, %c0_i32_0 : i32, i32
  }
  func.func @transform_6(%arg0: i32) -> (i32, i32) {
    %c0_i32 = arith.constant 0 : i32
    %c0_i32_0 = arith.constant 0 : i32
    %c0_i32_1 = arith.constant 0 : i32
    return %c0_i32, %c0_i32_0 : i32, i32
  }
  func.func @transform_7(%arg0: i32) -> (i32, i32) {
    %c0_i32 = arith.constant 0 : i32
    %c0_i32_0 = arith.constant 0 : i32
    %c0_i32_1 = arith.constant 0 : i32
    return %c0_i32, %c0_i32_0 : i32, i32
  }
  func.func @transform_8(%arg0: i32) -> (i32, i32) {
    %c0_i32 = arith.constant 0 : i32
    %c0_i32_0 = arith.constant 0 : i32
    %c0_i32_1 = arith.constant 0 : i32
    return %c0_i32, %c0_i32_0 : i32, i32
  }
  func.func @transform_9(%arg0: i32) -> (i32, i32) {
    %c0_i32 = arith.constant 0 : i32
    %c0_i32_0 = arith.constant 0 : i32
    %c0_i32_1 = arith.constant 0 : i32
    return %c0_i32, %c0_i32_0 : i32, i32
  }
  func.func @transform_10(%arg0: i32) -> (i32, i32) {
    %c0_i32 = arith.constant 0 : i32
    %c0_i32_0 = arith.constant 0 : i32
    %c0_i32_1 = arith.constant 0 : i32
    return %c0_i32, %c0_i32_0 : i32, i32
  }
  func.func @transform_11(%arg0: i32) -> (i32, i32) {
    %c0_i32 = arith.constant 0 : i32
    %c0_i32_0 = arith.constant 0 : i32
    %c0_i32_1 = arith.constant 0 : i32
    return %c0_i32, %c0_i32_0 : i32, i32
  }
  func.func @transform_12(%arg0: i32) -> (i32, i32) {
    %c0_i32 = arith.constant 0 : i32
    %c0_i32_0 = arith.constant 0 : i32
    %c0_i32_1 = arith.constant 0 : i32
    return %c0_i32, %c0_i32_0 : i32, i32
  }
  func.func @transform_13(%arg0: i32) -> (i32, i32, i32) {
    %c0_i32 = arith.constant 0 : i32
    %c0_i32_0 = arith.constant 0 : i32
    %c0_i32_1 = arith.constant 0 : i32
    %c0_i32_2 = arith.constant 0 : i32
    return %c0_i32, %c0_i32_0, %c0_i32_1 : i32, i32, i32
  }
  func.func @transform_14(%arg0: i32) -> (i32, i32) {
    %c0_i32 = arith.constant 0 : i32
    %c0_i32_0 = arith.constant 0 : i32
    %c0_i32_1 = arith.constant 0 : i32
    return %c0_i32, %c0_i32_0 : i32, i32
  }
  func.func @transform_15(%arg0: i32) -> (i32, i32, i32) {
    %c0_i32 = arith.constant 0 : i32
    %c0_i32_0 = arith.constant 0 : i32
    %c0_i32_1 = arith.constant 0 : i32
    return %arg0, %c0_i32, %c0_i32_0 : i32, i32, i32
  }
}

</mosaic_0001>

<llo_original>
// kernel: predictor_forward.1
$region0: #{predictor_forward.1}
  #allocation0 [shape = 'u32[]', space=smem, size = 0x4, offset = 0x4, fixed_abs, tag = 'smem constant byte address 0x4 - core index']
  #allocation1 [shape = 'u32[144,128]{1,0:T(1,128)}', space=vmem, size = 0x12000, scoped, tag = 'internal scratch']
  %s0 = inlined_call_operand.vmem [shape: f32[2,8,16], index: 0, kind: input, shape index: {}]
  %s1 = inlined_call_operand.vmem [shape: f32[16,32], index: 1, kind: input, shape index: {}]
  %s2 = inlined_call_operand.vmem [shape: f32[1,32], index: 2, kind: input, shape index: {}]
  %s3 = inlined_call_operand.vmem [shape: f32[1,32], index: 3, kind: input, shape index: {}]
  %s4 = inlined_call_operand.vmem [shape: f32[32,64], index: 4, kind: input, shape index: {}]
  %s5 = inlined_call_operand.vmem [shape: f32[1,64], index: 5, kind: input, shape index: {}]
  %s6 = inlined_call_operand.vmem [shape: f32[1,64], index: 6, kind: input, shape index: {}]
  %s7 = inlined_call_operand.vmem [shape: f32[64,128], index: 7, kind: input, shape index: {}]
  %s8 = inlined_call_operand.vmem [shape: f32[1,128], index: 8, kind: input, shape index: {}]
  %s9 = inlined_call_operand.vmem [shape: f32[1,128], index: 9, kind: input, shape index: {}]
  %s10 = inlined_call_operand.vmem [shape: f32[128,192], index: 10, kind: input, shape index: {}]
  %s11 = inlined_call_operand.vmem [shape: f32[1,192], index: 11, kind: input, shape index: {}]
  %s12 = inlined_call_operand.vmem [shape: f32[1,192], index: 12, kind: input, shape index: {}]
  %s13 = inlined_call_operand.vmem [shape: f32[2,192,128], index: 13, kind: input, shape index: {}]
  %s14 = inlined_call_operand.vmem [shape: f32[1,128], index: 14, kind: input, shape index: {}]
  %s15 = inlined_call_operand.hbm [shape: f32[2,4,128], index: 15, kind: output, shape index: {}]
  %s16 = sld [smem:[#allocation0]]
  $region93: #{predictor_forward.1} parent=0
    _
  %s18 = ssub.s32 1, %s16
  %s19 = scalar_select 0, %s18, %s16
  $region1: #{predictor_forward.1} parent=0
    #allocation2 [shape = 'u8[4096]{0}', space=vmem, size = 0x1000, scoped, tag = 'output window, operand 0']
    #allocation3 [shape = 's32[2]{0}', space=sflag, size = 0x8, scoped, tag = 'scoped memory for predictor_forward.1']
    %20 = vsyncpa [#allocation3], 0
    %s21 = scalar_lea.sflag [#allocation3], 1
    %22 = vsyncpa %s21, 0
    loop: start=0, step=1, limit=4
    $region2: #{predictor_forward.1} parent=1 // loop_pre_header
      _
    $region3: #{predictor_forward.1} parent=1 // loop_header
      %s24 = sphi 0, %s28
      %p25 = scmp.ge.s32.totalorder %s24, 4
      %s34 = sphi 0, %s36
      %s37 = sphi 0, %s34
      %s38 = sphi 0, %s37
      %s54 = sphi 0, %s38
      %s58 = sphi 0, %s58
      %s60 = sphi 0, %s58
      %s61 = sphi 0, %s60
      %s75 = sphi 0, %s61
      %s79 = sphi 0, %s79
      %s81 = sphi 0, %s79
      %s82 = sphi 0, %s81
      %s96 = sphi 0, %s82
      %s100 = sphi 0, %s100
      %s102 = sphi 0, %s100
      %s103 = sphi 0, %s102
      %s117 = sphi 0, %s103
      %s121 = sphi 0, %s121
      %s123 = sphi 0, %s121
      %s124 = sphi 0, %s123
      %s138 = sphi 0, %s124
      %s142 = sphi 0, %s142
      %s144 = sphi 0, %s142
      %s145 = sphi 0, %s144
      %s159 = sphi 0, %s145
      %s163 = sphi 0, %s163
      %s165 = sphi 0, %s163
      %s166 = sphi 0, %s165
      %s180 = sphi 0, %s166
      %s184 = sphi 0, %s184
      %s186 = sphi 0, %s184
      %s187 = sphi 0, %s186
      %s201 = sphi 0, %s187
      %s205 = sphi 0, %s205
      %s207 = sphi 0, %s205
      %s208 = sphi 0, %s207
      %s222 = sphi 0, %s208
      %s226 = sphi 0, %s226
      %s228 = sphi 0, %s226
      %s229 = sphi 0, %s228
      %s243 = sphi 0, %s229
      %s247 = sphi 0, %s247
      %s249 = sphi 0, %s247
      %s250 = sphi 0, %s249
      %s264 = sphi 0, %s250
      %s268 = sphi 0, %s268
      %s270 = sphi 0, %s268
      %s271 = sphi 0, %s270
      %s285 = sphi 0, %s271
      %s289 = sphi 0, %s289
      %s291 = sphi 0, %s289
      %s292 = sphi 0, %s291
      %s306 = sphi 0, %s292
      %s310 = sphi 0, %s310
      %s312 = sphi 0, %s310
      %s313 = sphi 0, %s312
      %s327 = sphi 0, %s313
      %s331 = sphi 0, %s331
      %s333 = sphi 0, %s331
      %s334 = sphi 0, %s333
      %s348 = sphi 0, %s334
      %s354 = sphi 0, %s356
      %s357 = sphi 0, %s354
      %s358 = sphi 0, %s357
      %s374 = sphi 0, %s358
    $region4: #{predictor_forward.1} parent=1 // loop_header_branch
      %27 = sbr.rel (%p25) target = $region8
    $region5: #{predictor_forward.1} parent=1 // loop_body
      %s29 = ssub.s32 %s24, 1
      %s30 = ssub.s32 %s24, 2
      %s31 = sadd.s32 %s24, 1
      %s32 = ssub.s32 %s24, %s31
      %p33 = scmp.eq.s32.totalorder %s32, 0
      %s35 = sadd.s32 %s34, 1
      %s36 = scalar_select %p33, %s34, %s35
      %p39 = pneg %p33
      %p40 = scmp.eq.s32.totalorder %s24, 1
      %p41 = por %p39, %p40
      %p42 = scmp.ne.s32.totalorder %s34, %s37
      %p43 = scmp.eq.s32.totalorder %s24, 0
      %p44 = por %p42, %p43
      %p45 = scmp.ne.s32.totalorder %s34, %s37
      %p46 = scmp.eq.s32.totalorder %s29, 1
      %p47 = por %p45, %p46
      %p48 = scmp.ne.s32.totalorder %s37, %s38
      %p49 = scmp.eq.s32.totalorder %s29, 0
      %p50 = por %p48, %p49
      %p51 = scmp.ne.s32.totalorder %s37, %s38
      %p52 = scmp.eq.s32.totalorder %s30, 1
      %p53 = por %p51, %p52
      %p55 = scmp.ne.s32.totalorder %s38, %s54
      %p56 = scmp.eq.s32.totalorder %s30, 0
      %p57 = por %p55, %p56
      %s59 = sadd.s32 %s58, 1
      %p62 = scmp.eq.s32.totalorder %s24, 1
      %p63 = scmp.ne.s32.totalorder %s58, %s60
      %p64 = scmp.eq.s32.totalorder %s24, 0
      %p65 = por %p63, %p64
      %p66 = scmp.ne.s32.totalorder %s58, %s60
      %p67 = scmp.eq.s32.totalorder %s29, 1
      %p68 = por %p66, %p67
      %p69 = scmp.ne.s32.totalorder %s60, %s61
      %p70 = scmp.eq.s32.totalorder %s29, 0
      %p71 = por %p69, %p70
      %p72 = scmp.ne.s32.totalorder %s60, %s61
      %p73 = scmp.eq.s32.totalorder %s30, 1
      %p74 = por %p72, %p73
      %p76 = scmp.ne.s32.totalorder %s61, %s75
      %p77 = scmp.eq.s32.totalorder %s30, 0
      %p78 = por %p76, %p77
      %s80 = sadd.s32 %s79, 1
      %p83 = scmp.eq.s32.totalorder %s24, 1
      %p84 = scmp.ne.s32.totalorder %s79, %s81
      %p85 = scmp.eq.s32.totalorder %s24, 0
      %p86 = por %p84, %p85
      %p87 = scmp.ne.s32.totalorder %s79, %s81
      %p88 = scmp.eq.s32.totalorder %s29, 1
      %p89 = por %p87, %p88
      %p90 = scmp.ne.s32.totalorder %s81, %s82
      %p91 = scmp.eq.s32.totalorder %s29, 0
      %p92 = por %p90, %p91
      %p93 = scmp.ne.s32.totalorder %s81, %s82
      %p94 = scmp.eq.s32.totalorder %s30, 1
      %p95 = por %p93, %p94
      %p97 = scmp.ne.s32.totalorder %s82, %s96
      %p98 = scmp.eq.s32.totalorder %s30, 0
      %p99 = por %p97, %p98
      %s101 = sadd.s32 %s100, 1
      %p104 = scmp.eq.s32.totalorder %s24, 1
      %p105 = scmp.ne.s32.totalorder %s100, %s102
      %p106 = scmp.eq.s32.totalorder %s24, 0
      %p107 = por %p105, %p106
      %p108 = scmp.ne.s32.totalorder %s100, %s102
      %p109 = scmp.eq.s32.totalorder %s29, 1
      %p110 = por %p108, %p109
      %p111 = scmp.ne.s32.totalorder %s102, %s103
      %p112 = scmp.eq.s32.totalorder %s29, 0
      %p113 = por %p111, %p112
      %p114 = scmp.ne.s32.totalorder %s102, %s103
      %p115 = scmp.eq.s32.totalorder %s30, 1
      %p116 = por %p114, %p115
      %p118 = scmp.ne.s32.totalorder %s103, %s117
      %p119 = scmp.eq.s32.totalorder %s30, 0
      %p120 = por %p118, %p119
      %s122 = sadd.s32 %s121, 1
      %p125 = scmp.eq.s32.totalorder %s24, 1
      %p126 = scmp.ne.s32.totalorder %s121, %s123
      %p127 = scmp.eq.s32.totalorder %s24, 0
      %p128 = por %p126, %p127
      %p129 = scmp.ne.s32.totalorder %s121, %s123
      %p130 = scmp.eq.s32.totalorder %s29, 1
      %p131 = por %p129, %p130
      %p132 = scmp.ne.s32.totalorder %s123, %s124
      %p133 = scmp.eq.s32.totalorder %s29, 0
      %p134 = por %p132, %p133
      %p135 = scmp.ne.s32.totalorder %s123, %s124
      %p136 = scmp.eq.s32.totalorder %s30, 1
      %p137 = por %p135, %p136
      %p139 = scmp.ne.s32.totalorder %s124, %s138
      %p140 = scmp.eq.s32.totalorder %s30, 0
      %p141 = por %p139, %p140
      %s143 = sadd.s32 %s142, 1
      %p146 = scmp.eq.s32.totalorder %s24, 1
      %p147 = scmp.ne.s32.totalorder %s142, %s144
      %p148 = scmp.eq.s32.totalorder %s24, 0
      %p149 = por %p147, %p148
      %p150 = scmp.ne.s32.totalorder %s142, %s144
      %p151 = scmp.eq.s32.totalorder %s29, 1
      %p152 = por %p150, %p151
      %p153 = scmp.ne.s32.totalorder %s144, %s145
      %p154 = scmp.eq.s32.totalorder %s29, 0
      %p155 = por %p153, %p154
      %p156 = scmp.ne.s32.totalorder %s144, %s145
      %p157 = scmp.eq.s32.totalorder %s30, 1
      %p158 = por %p156, %p157
      %p160 = scmp.ne.s32.totalorder %s145, %s159
      %p161 = scmp.eq.s32.totalorder %s30, 0
      %p162 = por %p160, %p161
      %s164 = sadd.s32 %s163, 1
      %p167 = scmp.eq.s32.totalorder %s24, 1
      %p168 = scmp.ne.s32.totalorder %s163, %s165
      %p169 = scmp.eq.s32.totalorder %s24, 0
      %p170 = por %p168, %p169
      %p171 = scmp.ne.s32.totalorder %s163, %s165
      %p172 = scmp.eq.s32.totalorder %s29, 1
      %p173 = por %p171, %p172
      %p174 = scmp.ne.s32.totalorder %s165, %s166
      %p175 = scmp.eq.s32.totalorder %s29, 0
      %p176 = por %p174, %p175
      %p177 = scmp.ne.s32.totalorder %s165, %s166
      %p178 = scmp.eq.s32.totalorder %s30, 1
      %p179 = por %p177, %p178
      %p181 = scmp.ne.s32.totalorder %s166, %s180
      %p182 = scmp.eq.s32.totalorder %s30, 0
      %p183 = por %p181, %p182
      %s185 = sadd.s32 %s184, 1
      %p188 = scmp.eq.s32.totalorder %s24, 1
      %p189 = scmp.ne.s32.totalorder %s184, %s186
      %p190 = scmp.eq.s32.totalorder %s24, 0
      %p191 = por %p189, %p190
      %p192 = scmp.ne.s32.totalorder %s184, %s186
      %p193 = scmp.eq.s32.totalorder %s29, 1
      %p194 = por %p192, %p193
      %p195 = scmp.ne.s32.totalorder %s186, %s187
      %p196 = scmp.eq.s32.totalorder %s29, 0
      %p197 = por %p195, %p196
      %p198 = scmp.ne.s32.totalorder %s186, %s187
      %p199 = scmp.eq.s32.totalorder %s30, 1
      %p200 = por %p198, %p199
      %p202 = scmp.ne.s32.totalorder %s187, %s201
      %p203 = scmp.eq.s32.totalorder %s30, 0
      %p204 = por %p202, %p203
      %s206 = sadd.s32 %s205, 1
      %p209 = scmp.eq.s32.totalorder %s24, 1
      %p210 = scmp.ne.s32.totalorder %s205, %s207
      %p211 = scmp.eq.s32.totalorder %s24, 0
      %p212 = por %p210, %p211
      %p213 = scmp.ne.s32.totalorder %s205, %s207
      %p214 = scmp.eq.s32.totalorder %s29, 1
      %p215 = por %p213, %p214
      %p216 = scmp.ne.s32.totalorder %s207, %s208
      %p217 = scmp.eq.s32.totalorder %s29, 0
      %p218 = por %p216, %p217
      %p219 = scmp.ne.s32.totalorder %s207, %s208
      %p220 = scmp.eq.s32.totalorder %s30, 1
      %p221 = por %p219, %p220
      %p223 = scmp.ne.s32.totalorder %s208, %s222
      %p224 = scmp.eq.s32.totalorder %s30, 0
      %p225 = por %p223, %p224
      %s227 = sadd.s32 %s226, 1
      %p230 = scmp.eq.s32.totalorder %s24, 1
      %p231 = scmp.ne.s32.totalorder %s226, %s228
      %p232 = scmp.eq.s32.totalorder %s24, 0
      %p233 = por %p231, %p232
      %p234 = scmp.ne.s32.totalorder %s226, %s228
      %p235 = scmp.eq.s32.totalorder %s29, 1
      %p236 = por %p234, %p235
      %p237 = scmp.ne.s32.totalorder %s228, %s229
      %p238 = scmp.eq.s32.totalorder %s29, 0
      %p239 = por %p237, %p238
      %p240 = scmp.ne.s32.totalorder %s228, %s229
      %p241 = scmp.eq.s32.totalorder %s30, 1
      %p242 = por %p240, %p241
      %p244 = scmp.ne.s32.totalorder %s229, %s243
      %p245 = scmp.eq.s32.totalorder %s30, 0
      %p246 = por %p244, %p245
      %s248 = sadd.s32 %s247, 1
      %p251 = scmp.eq.s32.totalorder %s24, 1
      %p252 = scmp.ne.s32.totalorder %s247, %s249
      %p253 = scmp.eq.s32.totalorder %s24, 0
      %p254 = por %p252, %p253
      %p255 = scmp.ne.s32.totalorder %s247, %s249
      %p256 = scmp.eq.s32.totalorder %s29, 1
      %p257 = por %p255, %p256
      %p258 = scmp.ne.s32.totalorder %s249, %s250
      %p259 = scmp.eq.s32.totalorder %s29, 0
      %p260 = por %p258, %p259
      %p261 = scmp.ne.s32.totalorder %s249, %s250
      %p262 = scmp.eq.s32.totalorder %s30, 1
      %p263 = por %p261, %p262
      %p265 = scmp.ne.s32.totalorder %s250, %s264
      %p266 = scmp.eq.s32.totalorder %s30, 0
      %p267 = por %p265, %p266
      %s269 = sadd.s32 %s268, 1
      %p272 = scmp.eq.s32.totalorder %s24, 1
      %p273 = scmp.ne.s32.totalorder %s268, %s270
      %p274 = scmp.eq.s32.totalorder %s24, 0
      %p275 = por %p273, %p274
      %p276 = scmp.ne.s32.totalorder %s268, %s270
      %p277 = scmp.eq.s32.totalorder %s29, 1
      %p278 = por %p276, %p277
      %p279 = scmp.ne.s32.totalorder %s270, %s271
      %p280 = scmp.eq.s32.totalorder %s29, 0
      %p281 = por %p279, %p280
      %p282 = scmp.ne.s32.totalorder %s270, %s271
      %p283 = scmp.eq.s32.totalorder %s30, 1
      %p284 = por %p282, %p283
      %p286 = scmp.ne.s32.totalorder %s271, %s285
      %p287 = scmp.eq.s32.totalorder %s30, 0
      %p288 = por %p286, %p287
      %s290 = sadd.s32 %s289, 1
      %p293 = scmp.eq.s32.totalorder %s24, 1
      %p294 = scmp.ne.s32.totalorder %s289, %s291
      %p295 = scmp.eq.s32.totalorder %s24, 0
      %p296 = por %p294, %p295
      %p297 = scmp.ne.s32.totalorder %s289, %s291
      %p298 = scmp.eq.s32.totalorder %s29, 1
      %p299 = por %p297, %p298
      %p300 = scmp.ne.s32.totalorder %s291, %s292
      %p301 = scmp.eq.s32.totalorder %s29, 0
      %p302 = por %p300, %p301
      %p303 = scmp.ne.s32.totalorder %s291, %s292
      %p304 = scmp.eq.s32.totalorder %s30, 1
      %p305 = por %p303, %p304
      %p307 = scmp.ne.s32.totalorder %s292, %s306
      %p308 = scmp.eq.s32.totalorder %s30, 0
      %p309 = por %p307, %p308
      %s311 = sadd.s32 %s310, 1
      %p314 = scmp.eq.s32.totalorder %s24, 1
      %p315 = scmp.ne.s32.totalorder %s310, %s312
      %p316 = scmp.eq.s32.totalorder %s24, 0
      %p317 = por %p315, %p316
      %p318 = scmp.ne.s32.totalorder %s310, %s312
      %p319 = scmp.eq.s32.totalorder %s29, 1
      %p320 = por %p318, %p319
      %p321 = scmp.ne.s32.totalorder %s312, %s313
      %p322 = scmp.eq.s32.totalorder %s29, 0
      %p323 = por %p321, %p322
      %p324 = scmp.ne.s32.totalorder %s312, %s313
      %p325 = scmp.eq.s32.totalorder %s30, 1
      %p326 = por %p324, %p325
      %p328 = scmp.ne.s32.totalorder %s313, %s327
      %p329 = scmp.eq.s32.totalorder %s30, 0
      %p330 = por %p328, %p329
      %s332 = sadd.s32 %s331, 1
      %p335 = scmp.eq.s32.totalorder %s24, 1
      %p336 = scmp.ne.s32.totalorder %s331, %s333
      %p337 = scmp.eq.s32.totalorder %s24, 0
      %p338 = por %p336, %p337
      %p339 = scmp.ne.s32.totalorder %s331, %s333
      %p340 = scmp.eq.s32.totalorder %s29, 1
      %p341 = por %p339, %p340
      %p342 = scmp.ne.s32.totalorder %s333, %s334
      %p343 = scmp.eq.s32.totalorder %s29, 0
      %p344 = por %p342, %p343
      %p345 = scmp.ne.s32.totalorder %s333, %s334
      %p346 = scmp.eq.s32.totalorder %s30, 1
      %p347 = por %p345, %p346
      %p349 = scmp.ne.s32.totalorder %s334, %s348
      %p350 = scmp.eq.s32.totalorder %s30, 0
      %p351 = por %p349, %p350
      %s352 = ssub.s32 %s24, %s31
      %p353 = scmp.eq.s32.totalorder %s352, 0
      %s355 = sadd.s32 %s354, 1
      %s356 = scalar_select %p353, %s354, %s355
      %p359 = pneg %p353
      %p360 = scmp.eq.s32.totalorder %s24, 1
      %p361 = por %p359, %p360
      %p362 = scmp.ne.s32.totalorder %s354, %s357
      %p363 = scmp.eq.s32.totalorder %s24, 0
      %p364 = por %p362, %p363
      %p365 = scmp.ne.s32.totalorder %s354, %s357
      %p366 = scmp.eq.s32.totalorder %s29, 1
      %p367 = por %p365, %p366
      %p368 = scmp.ne.s32.totalorder %s357, %s358
      %p369 = scmp.eq.s32.totalorder %s29, 0
      %p370 = por %p368, %p369
      %p371 = scmp.ne.s32.totalorder %s357, %s358
      %p372 = scmp.eq.s32.totalorder %s30, 1
      %p373 = por %p371, %p372
      %p375 = scmp.ne.s32.totalorder %s358, %s374
      %p376 = scmp.eq.s32.totalorder %s30, 0
      %p377 = por %p375, %p376
      %p378 = scmp.le.s32.totalorder 1, %s24
      %p379 = scmp.lt.s32.totalorder %s24, 3
      %p380 = pnand %p378, %p379
      %p381 = pneg %p380
      // Predicated region
      $region9: #{predictor_forward.1} parent=5 // pred_check
        _
      $region10: #{predictor_forward.1} parent=5 // pred_check_branch
        %383 = sbr.rel (%p380) target = $region12
      $region11: #{predictor_forward.1} parent=5 // pred_region
        %s384 = ssub.s32 %s24, 1
        // Predicated region
        $region13: #{predictor_forward.1} parent=11 // pred_check
          %p385 = pneg %p71
        $region14: #{predictor_forward.1} parent=11 // pred_check_branch
          %387 = sbr.rel (%p385) target = $region16
        $region15: #{predictor_forward.1} parent=11 // pred_region
          _
        $region16: #{predictor_forward.1} parent=11 // pred_fallthru
          _
        // Predicated region
        $region17: #{predictor_forward.1} parent=11 // pred_check
          %p388 = pneg %p92
        $region18: #{predictor_forward.1} parent=11 // pred_check_branch
          %390 = sbr.rel (%p388) target = $region20
        $region19: #{predictor_forward.1} parent=11 // pred_region
          _
        $region20: #{predictor_forward.1} parent=11 // pred_fallthru
          _
        // Predicated region
        $region21: #{predictor_forward.1} parent=11 // pred_check
          %p391 = pneg %p113
        $region22: #{predictor_forward.1} parent=11 // pred_check_branch
          %393 = sbr.rel (%p391) target = $region24
        $region23: #{predictor_forward.1} parent=11 // pred_region
          _
        $region24: #{predictor_forward.1} parent=11 // pred_fallthru
          _
        // Predicated region
        $region25: #{predictor_forward.1} parent=11 // pred_check
          %p394 = pneg %p134
        $region26: #{predictor_forward.1} parent=11 // pred_check_branch
          %396 = sbr.rel (%p394) target = $region28
        $region27: #{predictor_forward.1} parent=11 // pred_region
          _
        $region28: #{predictor_forward.1} parent=11 // pred_fallthru
          _
        // Predicated region
        $region29: #{predictor_forward.1} parent=11 // pred_check
          %p397 = pneg %p155
        $region30: #{predictor_forward.1} parent=11 // pred_check_branch
          %399 = sbr.rel (%p397) target = $region32
        $region31: #{predictor_forward.1} parent=11 // pred_region
          _
        $region32: #{predictor_forward.1} parent=11 // pred_fallthru
          _
        // Predicated region
        $region33: #{predictor_forward.1} parent=11 // pred_check
          %p400 = pneg %p176
        $region34: #{predictor_forward.1} parent=11 // pred_check_branch
          %402 = sbr.rel (%p400) target = $region36
        $region35: #{predictor_forward.1} parent=11 // pred_region
          _
        $region36: #{predictor_forward.1} parent=11 // pred_fallthru
          _
        // Predicated region
        $region37: #{predictor_forward.1} parent=11 // pred_check
          %p403 = pneg %p197
        $region38: #{predictor_forward.1} parent=11 // pred_check_branch
          %405 = sbr.rel (%p403) target = $region40
        $region39: #{predictor_forward.1} parent=11 // pred_region
          _
        $region40: #{predictor_forward.1} parent=11 // pred_fallthru
          _
        // Predicated region
        $region41: #{predictor_forward.1} parent=11 // pred_check
          %p406 = pneg %p218
        $region42: #{predictor_forward.1} parent=11 // pred_check_branch
          %408 = sbr.rel (%p406) target = $region44
        $region43: #{predictor_forward.1} parent=11 // pred_region
          _
        $region44: #{predictor_forward.1} parent=11 // pred_fallthru
          _
        // Predicated region
        $region45: #{predictor_forward.1} parent=11 // pred_check
          %p409 = pneg %p239
        $region46: #{predictor_forward.1} parent=11 // pred_check_branch
          %411 = sbr.rel (%p409) target = $region48
        $region47: #{predictor_forward.1} parent=11 // pred_region
          _
        $region48: #{predictor_forward.1} parent=11 // pred_fallthru
          _
        // Predicated region
        $region49: #{predictor_forward.1} parent=11 // pred_check
          %p412 = pneg %p260
        $region50: #{predictor_forward.1} parent=11 // pred_check_branch
          %414 = sbr.rel (%p412) target = $region52
        $region51: #{predictor_forward.1} parent=11 // pred_region
          _
        $region52: #{predictor_forward.1} parent=11 // pred_fallthru
          _
        // Predicated region
        $region53: #{predictor_forward.1} parent=11 // pred_check
          %p415 = pneg %p281
        $region54: #{predictor_forward.1} parent=11 // pred_check_branch
          %417 = sbr.rel (%p415) target = $region56
        $region55: #{predictor_forward.1} parent=11 // pred_region
          _
        $region56: #{predictor_forward.1} parent=11 // pred_fallthru
          _
        // Predicated region
        $region57: #{predictor_forward.1} parent=11 // pred_check
          %p418 = pneg %p302
        $region58: #{predictor_forward.1} parent=11 // pred_check_branch
          %420 = sbr.rel (%p418) target = $region60
        $region59: #{predictor_forward.1} parent=11 // pred_region
          _
        $region60: #{predictor_forward.1} parent=11 // pred_fallthru
          _
        // Predicated region
        $region61: #{predictor_forward.1} parent=11 // pred_check
          %p421 = pneg %p323
        $region62: #{predictor_forward.1} parent=11 // pred_check_branch
          %423 = sbr.rel (%p421) target = $region64
        $region63: #{predictor_forward.1} parent=11 // pred_region
          _
        $region64: #{predictor_forward.1} parent=11 // pred_fallthru
          _
        // Predicated region
        $region65: #{predictor_forward.1} parent=11 // pred_check
          %p424 = pneg %p344
        $region66: #{predictor_forward.1} parent=11 // pred_check_branch
          %426 = sbr.rel (%p424) target = $region68
        $region67: #{predictor_forward.1} parent=11 // pred_region
          _
        $region68: #{predictor_forward.1} parent=11 // pred_fallthru
          _
      $region12: #{predictor_forward.1} parent=5 // pred_fallthru
        _
      %p427 = scmp.lt.s32.totalorder %s24, 2
      // Predicated region
      $region69: #{predictor_forward.1} parent=5 // pred_check
        %p428 = pneg %p427
      $region70: #{predictor_forward.1} parent=5 // pred_check_branch
        %430 = sbr.rel (%p428) target = $region72
      $region71: #{predictor_forward.1} parent=5 // pred_region
        // Predicated region
        $region73: #{predictor_forward.1} parent=71 // pred_check
          %p431 = pneg %p44
        $region74: #{predictor_forward.1} parent=71 // pred_check_branch
          %433 = sbr.rel (%p431) target = $region76
        $region75: #{predictor_forward.1} parent=71 // pred_region
          %p434 = scmp.lt.s32.totalorder %s24, 1
          %s435 = scalar_select %p434, %s24, 1
          %s436 = smul.addr %s435, 8
          %s437 = scalar_lea.vmem %s0, %s436
        $region76: #{predictor_forward.1} parent=71 // pred_fallthru
          _
      $region72: #{predictor_forward.1} parent=5 // pred_fallthru
        _
      %p438 = scmp.le.s32.totalorder 1, %s24
      %p439 = scmp.lt.s32.totalorder %s24, 3
      %p440 = pnand %p438, %p439
      %p441 = pneg %p440
      // Predicated region
      $region77: #{predictor_forward.1} parent=5 // pred_check
        _
      $region78: #{predictor_forward.1} parent=5 // pred_check_branch
        %443 = sbr.rel (%p440) target = $region80
      $region79: #{predictor_forward.1} parent=5 // pred_region
        %s444 = ssub.s32 %s24, 1
        %p445 = scmp.lt.s32.totalorder %s29, 1
        %s446 = scalar_select %p445, %s29, 1
        %s447 = smul.addr %s446, 8
        %s448 = scalar_lea.vmem %s0, %s447
        %p449 = pneg %p50
        %p450 = pneg %p47
        %p451 = pneg %p71
        %p452 = pneg %p68
        %p453 = pneg %p92
        %p454 = pneg %p89
        %p455 = pneg %p113
        %p456 = pneg %p110
        %p457 = pneg %p134
        %p458 = pneg %p131
        %p459 = pneg %p155
        %p460 = pneg %p152
        %p461 = pneg %p176
        %p462 = pneg %p173
        %p463 = pneg %p197
        %p464 = pneg %p194
        %p465 = pneg %p218
        %p466 = pneg %p215
        %p467 = pneg %p239
        %p468 = pneg %p236
        %p469 = pneg %p260
        %p470 = pneg %p257
        %p471 = pneg %p281
        %p472 = pneg %p278
        %p473 = pneg %p302
        %p474 = pneg %p299
        %p475 = pneg %p323
        %p476 = pneg %p320
        %p477 = pneg %p344
        %p478 = pneg %p341
        %p479 = pneg %p370
        %p480 = pneg %p367
        %s481 = sand.u32 %s357, 1
        %s482 = scalar_lea.sflag [#allocation3], %s481
        %s483 = sand.u32 %s357, 1
        %s484 = smul.addr %s483, 4
        %s485 = scalar_lea.vmem [#allocation2], %s484
        %p486 = scmp.lt.s32.totalorder %s29, 1
        %s487 = scalar_select %p486, %s29, 1
        %s488 = smul.addr %s487, 8
        %s489 = scalar_lea.vmem %s0, %s488
        %v490 = vld [vmem:[%s489] sm:$0xff]
        %v491 = vld [vmem:[%s1] sm:$0xff]
        %v492 = vld [vmem:[%s1 + $0x8] sm:$0xff]
        %vm493 = vcmask 130048
        %v495 = vsel %vm493, %v490, 0
        %497 = vmatprep.subr.mxu0 0.0
        %498 = vmatpush1.msra.mxu0 0.0
        %499 = vmatprep.subr.mxu0 0.0
        %500 = vmatpush1.msra.mxu0 0.0
        %501 = vmatprep.subr.mxu0 0.0
        %502 = vmatpush1.msra.mxu0 0.0
        %503 = vmatprep.subr.mxu0 0.0
        %504 = vmatpush1.msra.mxu0 0.0
        %505 = vmatprep.subr.mxu0 0.0
        %506 = vmatpush1.msra.mxu0 0.0
        %507 = vmatprep.subr.mxu0 0.0
        %508 = vmatpush1.msra.mxu0 0.0
        %509 = vmatprep.subr.mxu0 0.0
        %510 = vmatpush1.msra.mxu0 0.0
        %511 = vmatprep.subr.mxu0 0.0
        %512 = vmatpush1.msra.mxu0 0.0
        %513 = vmatprep.subr.mxu0 0.0
        %514 = vmatpush1.msra.mxu0 0.0
        %515 = vmatprep.subr.mxu0 0.0
        %516 = vmatpush1.msra.mxu0 0.0
        %517 = vmatprep.subr.mxu0 0.0
        %518 = vmatpush1.msra.mxu0 0.0
        %519 = vmatprep.subr.mxu0 0.0
        %520 = vmatpush1.msra.mxu0 0.0
        %521 = vmatprep.subr.mxu0 0.0
        %522 = vmatpush1.msra.mxu0 0.0
        %523 = vmatprep.subr.mxu0 0.0
        %524 = vmatpush1.msra.mxu0 0.0
        %525 = vmatprep.subr.mxu0 0.0
        %526 = vmatpush1.msra.mxu0 %v492
        %527 = vmatprep.subr.mxu0 0.0
        %528 = vmatpush1.msra.mxu0 %v491
        %529 = vmatprep.subr.mxu0 0.0
        %530 = vmatpush2.msra.mxu0 0.0
        %531 = vmatprep.subr.mxu0 0.0
        %532 = vmatpush2.msra.mxu0 0.0
        %533 = vmatprep.subr.mxu0 0.0
        %534 = vmatpush2.msra.mxu0 0.0
        %535 = vmatprep.subr.mxu0 0.0
        %536 = vmatpush2.msra.mxu0 0.0
        %537 = vmatprep.subr.mxu0 0.0
        %538 = vmatpush2.msra.mxu0 0.0
        %539 = vmatprep.subr.mxu0 0.0
        %540 = vmatpush2.msra.mxu0 0.0
        %541 = vmatprep.subr.mxu0 0.0
        %542 = vmatpush2.msra.mxu0 0.0
        %543 = vmatprep.subr.mxu0 0.0
        %544 = vmatpush2.msra.mxu0 0.0
        %545 = vmatprep.subr.mxu0 0.0
        %546 = vmatpush2.msra.mxu0 0.0
        %547 = vmatprep.subr.mxu0 0.0
        %548 = vmatpush2.msra.mxu0 0.0
        %549 = vmatprep.subr.mxu0 0.0
        %550 = vmatpush2.msra.mxu0 0.0
        %551 = vmatprep.subr.mxu0 0.0
        %552 = vmatpush2.msra.mxu0 0.0
        %553 = vmatprep.subr.mxu0 0.0
        %554 = vmatpush2.msra.mxu0 0.0
        %555 = vmatprep.subr.mxu0 0.0
        %556 = vmatpush2.msra.mxu0 0.0
        %557 = vmatprep.subr.mxu0 0.0
        %558 = vmatpush2.msra.mxu0 0.0
        %559 = vmatprep.subr.mxu0 0.0
        %560 = vmatpush2.msra.mxu0 0.0
        %561 = vmatprep.mubr.f32.mxu0 0.0
        %562 = vmatmul.mubr.f32.gmra.mxu0 %v495
        %v563 = vpop.f32.mrf.mxu0
        %v564 = vadd.f32 0.0, %v563
        %v565 = vpop.f32.mrf.mxu0
        %566 = vdwg.mxu0
        %v567 = vld [vmem:[%s2] sm:$0x1]
        %v569 = vlaneseq
        %v570 = vshrl.u32 %v569, 7
        %v571 = vsub.s32 0, %v570
        %v572 = vrot.slane %v567, %v571
        %v574 = vmul.f32 %v564, %v572
        %v575 = vld [vmem:[%s3] sm:$0x1]
        %v577 = vlaneseq
        %v578 = vshrl.u32 %v577, 7
        %v579 = vsub.s32 0, %v578
        %v580 = vrot.slane %v575, %v579
        %v582 = vadd.f32 %v574, %v580
        %v583 = vmax.f32 %v582, 0.0
        %v584 = vld [vmem:[%s4] sm:$0xff]
        %v585 = vld [vmem:[%s4 + $0x8] sm:$0xff]
        %v586 = vld [vmem:[%s4 + $0x10] sm:$0xff]
        %v587 = vld [vmem:[%s4 + $0x18] sm:$0xff]
        %vm588 = vcmask 261120
        %v590 = vsel %vm588, %v583, 0
        %592 = vmatprep.subr.mxu0 0.0
        %593 = vmatpush1.msra.mxu0 0.0
        %594 = vmatprep.subr.mxu0 0.0
        %595 = vmatpush1.msra.mxu0 0.0
        %596 = vmatprep.subr.mxu0 0.0
        %597 = vmatpush1.msra.mxu0 0.0
        %598 = vmatprep.subr.mxu0 0.0
        %599 = vmatpush1.msra.mxu0 0.0
        %600 = vmatprep.subr.mxu0 0.0
        %601 = vmatpush1.msra.mxu0 0.0
        %602 = vmatprep.subr.mxu0 0.0
        %603 = vmatpush1.msra.mxu0 0.0
        %604 = vmatprep.subr.mxu0 0.0
        %605 = vmatpush1.msra.mxu0 0.0
        %606 = vmatprep.subr.mxu0 0.0
        %607 = vmatpush1.msra.mxu0 0.0
        %608 = vmatprep.subr.mxu0 0.0
        %609 = vmatpush1.msra.mxu0 0.0
        %610 = vmatprep.subr.mxu0 0.0
        %611 = vmatpush1.msra.mxu0 0.0
        %612 = vmatprep.subr.mxu0 0.0
        %613 = vmatpush1.msra.mxu0 0.0
        %614 = vmatprep.subr.mxu0 0.0
        %615 = vmatpush1.msra.mxu0 0.0
        %616 = vmatprep.subr.mxu0 0.0
        %617 = vmatpush1.msra.mxu0 %v587
        %618 = vmatprep.subr.mxu0 0.0
        %619 = vmatpush1.msra.mxu0 %v586
        %620 = vmatprep.subr.mxu0 0.0
        %621 = vmatpush1.msra.mxu0 %v585
        %622 = vmatprep.subr.mxu0 0.0
        %623 = vmatpush1.msra.mxu0 %v584
        %624 = vmatprep.subr.mxu0 0.0
        %625 = vmatpush2.msra.mxu0 0.0
        %626 = vmatprep.subr.mxu0 0.0
        %627 = vmatpush2.msra.mxu0 0.0
        %628 = vmatprep.subr.mxu0 0.0
        %629 = vmatpush2.msra.mxu0 0.0
        %630 = vmatprep.subr.mxu0 0.0
        %631 = vmatpush2.msra.mxu0 0.0
        %632 = vmatprep.subr.mxu0 0.0
        %633 = vmatpush2.msra.mxu0 0.0
        %634 = vmatprep.subr.mxu0 0.0
        %635 = vmatpush2.msra.mxu0 0.0
        %636 = vmatprep.subr.mxu0 0.0
        %637 = vmatpush2.msra.mxu0 0.0
        %638 = vmatprep.subr.mxu0 0.0
        %639 = vmatpush2.msra.mxu0 0.0
        %640 = vmatprep.subr.mxu0 0.0
        %641 = vmatpush2.msra.mxu0 0.0
        %642 = vmatprep.subr.mxu0 0.0
        %643 = vmatpush2.msra.mxu0 0.0
        %644 = vmatprep.subr.mxu0 0.0
        %645 = vmatpush2.msra.mxu0 0.0
        %646 = vmatprep.subr.mxu0 0.0
        %647 = vmatpush2.msra.mxu0 0.0
        %648 = vmatprep.subr.mxu0 0.0
        %649 = vmatpush2.msra.mxu0 0.0
        %650 = vmatprep.subr.mxu0 0.0
        %651 = vmatpush2.msra.mxu0 0.0
        %652 = vmatprep.subr.mxu0 0.0
        %653 = vmatpush2.msra.mxu0 0.0
        %654 = vmatprep.subr.mxu0 0.0
        %655 = vmatpush2.msra.mxu0 0.0
        %656 = vmatprep.mubr.f32.mxu0 0.0
        %657 = vmatmul.mubr.f32.gmra.mxu0 %v590
        %v658 = vpop.f32.mrf.mxu0
        %v659 = vadd.f32 0.0, %v658
        %v660 = vpop.f32.mrf.mxu0
        %661 = vdwg.mxu0
        %v662 = vld [vmem:[%s5] sm:$0x1]
        %v664 = vlaneseq
        %v665 = vshrl.u32 %v664, 7
        %v666 = vsub.s32 0, %v665
        %v667 = vrot.slane %v662, %v666
        %v669 = vmul.f32 %v659, %v667
        %v670 = vld [vmem:[%s6] sm:$0x1]
        %v672 = vlaneseq
        %v673 = vshrl.u32 %v672, 7
        %v674 = vsub.s32 0, %v673
        %v675 = vrot.slane %v670, %v674
        %v677 = vadd.f32 %v669, %v675
        %v678 = vmax.f32 %v677, 0.0
        %v679 = vld [vmem:[%s7] sm:$0xff]
        %v680 = vld [vmem:[%s7 + $0x8] sm:$0xff]
        %v681 = vld [vmem:[%s7 + $0x10] sm:$0xff]
        %v682 = vld [vmem:[%s7 + $0x18] sm:$0xff]
        %v683 = vld [vmem:[%s7 + $0x20] sm:$0xff]
        %v684 = vld [vmem:[%s7 + $0x28] sm:$0xff]
        %v685 = vld [vmem:[%s7 + $0x30] sm:$0xff]
        %v686 = vld [vmem:[%s7 + $0x38] sm:$0xff]
        %vm687 = vcmask 523264
        %v689 = vsel %vm687, %v678, 0
        %691 = vmatprep.subr.mxu0 0.0
        %692 = vmatpush1.msra.mxu0 0.0
        %693 = vmatprep.subr.mxu0 0.0
        %694 = vmatpush1.msra.mxu0 0.0
        %695 = vmatprep.subr.mxu0 0.0
        %696 = vmatpush1.msra.mxu0 0.0
        %697 = vmatprep.subr.mxu0 0.0
        %698 = vmatpush1.msra.mxu0 0.0
        %699 = vmatprep.subr.mxu0 0.0
        %700 = vmatpush1.msra.mxu0 0.0
        %701 = vmatprep.subr.mxu0 0.0
        %702 = vmatpush1.msra.mxu0 0.0
        %703 = vmatprep.subr.mxu0 0.0
        %704 = vmatpush1.msra.mxu0 0.0
        %705 = vmatprep.subr.mxu0 0.0
        %706 = vmatpush1.msra.mxu0 0.0
        %707 = vmatprep.subr.mxu0 0.0
        %708 = vmatpush1.msra.mxu0 %v686
        %709 = vmatprep.subr.mxu0 0.0
        %710 = vmatpush1.msra.mxu0 %v685
        %711 = vmatprep.subr.mxu0 0.0
        %712 = vmatpush1.msra.mxu0 %v684
        %713 = vmatprep.subr.mxu0 0.0
        %714 = vmatpush1.msra.mxu0 %v683
        %715 = vmatprep.subr.mxu0 0.0
        %716 = vmatpush1.msra.mxu0 %v682
        %717 = vmatprep.subr.mxu0 0.0
        %718 = vmatpush1.msra.mxu0 %v681
        %719 = vmatprep.subr.mxu0 0.0
        %720 = vmatpush1.msra.mxu0 %v680
        %721 = vmatprep.subr.mxu0 0.0
        %722 = vmatpush1.msra.mxu0 %v679
        %723 = vmatprep.subr.mxu0 0.0
        %724 = vmatpush2.msra.mxu0 0.0
        %725 = vmatprep.subr.mxu0 0.0
        %726 = vmatpush2.msra.mxu0 0.0
        %727 = vmatprep.subr.mxu0 0.0
        %728 = vmatpush2.msra.mxu0 0.0
        %729 = vmatprep.subr.mxu0 0.0
        %730 = vmatpush2.msra.mxu0 0.0
        %731 = vmatprep.subr.mxu0 0.0
        %732 = vmatpush2.msra.mxu0 0.0
        %733 = vmatprep.subr.mxu0 0.0
        %734 = vmatpush2.msra.mxu0 0.0
        %735 = vmatprep.subr.mxu0 0.0
        %736 = vmatpush2.msra.mxu0 0.0
        %737 = vmatprep.subr.mxu0 0.0
        %738 = vmatpush2.msra.mxu0 0.0
        %739 = vmatprep.subr.mxu0 0.0
        %740 = vmatpush2.msra.mxu0 0.0
        %741 = vmatprep.subr.mxu0 0.0
        %742 = vmatpush2.msra.mxu0 0.0
        %743 = vmatprep.subr.mxu0 0.0
        %744 = vmatpush2.msra.mxu0 0.0
        %745 = vmatprep.subr.mxu0 0.0
        %746 = vmatpush2.msra.mxu0 0.0
        %747 = vmatprep.subr.mxu0 0.0
        %748 = vmatpush2.msra.mxu0 0.0
        %749 = vmatprep.subr.mxu0 0.0
        %750 = vmatpush2.msra.mxu0 0.0
        %751 = vmatprep.subr.mxu0 0.0
        %752 = vmatpush2.msra.mxu0 0.0
        %753 = vmatprep.subr.mxu0 0.0
        %754 = vmatpush2.msra.mxu0 0.0
        %755 = vmatprep.mubr.f32.mxu0 0.0
        %756 = vmatmul.mubr.f32.gmra.mxu0 %v689
        %v757 = vpop.f32.mrf.mxu0
        %v758 = vadd.f32 0.0, %v757
        %v759 = vpop.f32.mrf.mxu0
        %760 = vdwg.mxu0
        %v761 = vld [vmem:[%s8] sm:$0x1]
        %v763 = vlaneseq
        %v764 = vshrl.u32 %v763, 7
        %v765 = vsub.s32 0, %v764
        %v766 = vrot.slane %v761, %v765
        %v768 = vmul.f32 %v758, %v766
        %v769 = vld [vmem:[%s9] sm:$0x1]
        %v771 = vlaneseq
        %v772 = vshrl.u32 %v771, 7
        %v773 = vsub.s32 0, %v772
        %v774 = vrot.slane %v769, %v773
        %v776 = vadd.f32 %v768, %v774
        %v777 = vmax.f32 %v776, 0.0
        %v778 = vld [vmem:[%s10] sm:$0xff]
        %v779 = vld [vmem:[%s10 + $0x8] sm:$0xff]
        %v780 = vld [vmem:[%s10 + $0x10] sm:$0xff]
        %v781 = vld [vmem:[%s10 + $0x18] sm:$0xff]
        %v782 = vld [vmem:[%s10 + $0x20] sm:$0xff]
        %v783 = vld [vmem:[%s10 + $0x28] sm:$0xff]
        %v784 = vld [vmem:[%s10 + $0x30] sm:$0xff]
        %v785 = vld [vmem:[%s10 + $0x38] sm:$0xff]
        %v786 = vld [vmem:[%s10 + $0x40] sm:$0xff]
        %v787 = vld [vmem:[%s10 + $0x48] sm:$0xff]
        %v788 = vld [vmem:[%s10 + $0x50] sm:$0xff]
        %v789 = vld [vmem:[%s10 + $0x58] sm:$0xff]
        %v790 = vld [vmem:[%s10 + $0x60] sm:$0xff]
        %v791 = vld [vmem:[%s10 + $0x68] sm:$0xff]
        %v792 = vld [vmem:[%s10 + $0x70] sm:$0xff]
        %v793 = vld [vmem:[%s10 + $0x78] sm:$0xff]
        %v794 = vld [vmem:[%s10 + $0x80] sm:$0xff]
        %v795 = vld [vmem:[%s10 + $0x88] sm:$0xff]
        %v796 = vld [vmem:[%s10 + $0x90] sm:$0xff]
        %v797 = vld [vmem:[%s10 + $0x98] sm:$0xff]
        %v798 = vld [vmem:[%s10 + $0xa0] sm:$0xff]
        %v799 = vld [vmem:[%s10 + $0xa8] sm:$0xff]
        %v800 = vld [vmem:[%s10 + $0xb0] sm:$0xff]
        %v801 = vld [vmem:[%s10 + $0xb8] sm:$0xff]
        %v802 = vld [vmem:[%s10 + $0xc0] sm:$0xff]
        %v803 = vld [vmem:[%s10 + $0xc8] sm:$0xff]
        %v804 = vld [vmem:[%s10 + $0xd0] sm:$0xff]
        %v805 = vld [vmem:[%s10 + $0xd8] sm:$0xff]
        %v806 = vld [vmem:[%s10 + $0xe0] sm:$0xff]
        %v807 = vld [vmem:[%s10 + $0xe8] sm:$0xff]
        %v808 = vld [vmem:[%s10 + $0xf0] sm:$0xff]
        %v809 = vld [vmem:[%s10 + $0xf8] sm:$0xff]
        %810 = vmatprep.subr.mxu0 %v809
        %811 = vmatpush1.msra.mxu0 %v808
        %812 = vmatprep.subr.mxu0 %v807
        %813 = vmatpush1.msra.mxu0 %v806
        %814 = vmatprep.subr.mxu0 %v805
        %815 = vmatpush1.msra.mxu0 %v804
        %816 = vmatprep.subr.mxu0 %v803
        %817 = vmatpush1.msra.mxu0 %v802
        %818 = vmatprep.subr.mxu0 %v801
        %819 = vmatpush1.msra.mxu0 %v800
        %820 = vmatprep.subr.mxu0 %v799
        %821 = vmatpush1.msra.mxu0 %v798
        %822 = vmatprep.subr.mxu0 %v797
        %823 = vmatpush1.msra.mxu0 %v796
        %824 = vmatprep.subr.mxu0 %v795
        %825 = vmatpush1.msra.mxu0 %v794
        %826 = vmatprep.subr.mxu0 %v793
        %827 = vmatpush1.msra.mxu0 %v792
        %828 = vmatprep.subr.mxu0 %v791
        %829 = vmatpush1.msra.mxu0 %v790
        %830 = vmatprep.subr.mxu0 %v789
        %831 = vmatpush1.msra.mxu0 %v788
        %832 = vmatprep.subr.mxu0 %v787
        %833 = vmatpush1.msra.mxu0 %v786
        %834 = vmatprep.subr.mxu0 %v785
        %835 = vmatpush1.msra.mxu0 %v784
        %836 = vmatprep.subr.mxu0 %v783
        %837 = vmatpush1.msra.mxu0 %v782
        %838 = vmatprep.subr.mxu0 %v781
        %839 = vmatpush1.msra.mxu0 %v780
        %840 = vmatprep.subr.mxu0 %v779
        %841 = vmatpush1.msra.mxu0 %v778
        %842 = vmatprep.subr.mxu0 0.0
        %843 = vmatpush2.msra.mxu0 0.0
        %844 = vmatprep.subr.mxu0 0.0
        %845 = vmatpush2.msra.mxu0 0.0
        %846 = vmatprep.subr.mxu0 0.0
        %847 = vmatpush2.msra.mxu0 0.0
        %848 = vmatprep.subr.mxu0 0.0
        %849 = vmatpush2.msra.mxu0 0.0
        %850 = vmatprep.subr.mxu0 0.0
        %851 = vmatpush2.msra.mxu0 0.0
        %852 = vmatprep.subr.mxu0 0.0
        %853 = vmatpush2.msra.mxu0 0.0
        %854 = vmatprep.subr.mxu0 0.0
        %855 = vmatpush2.msra.mxu0 0.0
        %856 = vmatprep.subr.mxu0 0.0
        %857 = vmatpush2.msra.mxu0 0.0
        %858 = vmatprep.subr.mxu0 0.0
        %859 = vmatpush2.msra.mxu0 0.0
        %860 = vmatprep.subr.mxu0 0.0
        %861 = vmatpush2.msra.mxu0 0.0
        %862 = vmatprep.subr.mxu0 0.0
        %863 = vmatpush2.msra.mxu0 0.0
        %864 = vmatprep.subr.mxu0 0.0
        %865 = vmatpush2.msra.mxu0 0.0
        %866 = vmatprep.subr.mxu0 0.0
        %867 = vmatpush2.msra.mxu0 0.0
        %868 = vmatprep.subr.mxu0 0.0
        %869 = vmatpush2.msra.mxu0 0.0
        %870 = vmatprep.subr.mxu0 0.0
        %871 = vmatpush2.msra.mxu0 0.0
        %872 = vmatprep.subr.mxu0 0.0
        %873 = vmatpush2.msra.mxu0 0.0
        %874 = vmatprep.mubr.f32.mxu0 0.0
        %875 = vmatmul.mubr.f32.gmra.mxu0 %v777
        %v876 = vpop.f32.mrf.mxu0
        %v877 = vadd.f32 0.0, %v876
        %v878 = vpop.f32.mrf.mxu0
        %v879 = vadd.f32 0.0, %v878
        %880 = vdwg.mxu0
        %v881 = vld [vmem:[%s11] sm:$0x3]
        %v883 = vlaneseq
        %v884 = vshrl.u32 %v883, 7
        %v885 = vsub.s32 0, %v884
        %v886 = vrot.slane %v881, %v885
        %v887 = vlaneseq
        %v888 = vshrl.u32 %v887, 7
        %v889 = vsub.s32 1, %v888
        %v890 = vrot.slane %v881, %v889
        %v893 = vmul.f32 %v877, %v886
        %v894 = vmul.f32 %v879, %v890
        %v895 = vld [vmem:[%s12] sm:$0x3]
        %v897 = vlaneseq
        %v898 = vshrl.u32 %v897, 7
        %v899 = vsub.s32 0, %v898
        %v900 = vrot.slane %v895, %v899
        %v901 = vlaneseq
        %v902 = vshrl.u32 %v901, 7
        %v903 = vsub.s32 1, %v902
        %v904 = vrot.slane %v895, %v903
        %v907 = vadd.f32 %v893, %v900
        %v908 = vadd.f32 %v894, %v904
        %v909 = vmax.f32 %v907, 0.0
        %v910 = vmax.f32 %v908, 0.0
        %v911 = vld [vmem:[%s14] sm:$0x1]
        %v912 = vld [vmem:[%s13] sm:$0xff]
        %v913 = vld [vmem:[%s13 + $0x8] sm:$0xff]
        %v914 = vld [vmem:[%s13 + $0x10] sm:$0xff]
        %v915 = vld [vmem:[%s13 + $0x18] sm:$0xff]
        %v916 = vld [vmem:[%s13 + $0x20] sm:$0xff]
        %v917 = vld [vmem:[%s13 + $0x28] sm:$0xff]
        %v918 = vld [vmem:[%s13 + $0x30] sm:$0xff]
        %v919 = vld [vmem:[%s13 + $0x38] sm:$0xff]
        %v920 = vld [vmem:[%s13 + $0x40] sm:$0xff]
        %v921 = vld [vmem:[%s13 + $0x48] sm:$0xff]
        %v922 = vld [vmem:[%s13 + $0x50] sm:$0xff]
        %v923 = vld [vmem:[%s13 + $0x58] sm:$0xff]
        %v924 = vld [vmem:[%s13 + $0x60] sm:$0xff]
        %v925 = vld [vmem:[%s13 + $0x68] sm:$0xff]
        %v926 = vld [vmem:[%s13 + $0x70] sm:$0xff]
        %v927 = vld [vmem:[%s13 + $0x78] sm:$0xff]
        %v928 = vld [vmem:[%s13 + $0x80] sm:$0xff]
        %v929 = vld [vmem:[%s13 + $0x88] sm:$0xff]
        %v930 = vld [vmem:[%s13 + $0x90] sm:$0xff]
        %v931 = vld [vmem:[%s13 + $0x98] sm:$0xff]
        %v932 = vld [vmem:[%s13 + $0xa0] sm:$0xff]
        %v933 = vld [vmem:[%s13 + $0xa8] sm:$0xff]
        %v934 = vld [vmem:[%s13 + $0xb0] sm:$0xff]
        %v935 = vld [vmem:[%s13 + $0xb8] sm:$0xff]
        %v937 = vsel %vm687, %v910, 0
        %939 = vmatprep.subr.mxu0 0.0
        %940 = vmatpush1.msra.mxu0 %v927
        %941 = vmatprep.subr.mxu0 0.0
        %942 = vmatpush1.msra.mxu0 %v926
        %943 = vmatprep.subr.mxu0 0.0
        %944 = vmatpush1.msra.mxu0 %v925
        %945 = vmatprep.subr.mxu0 0.0
        %946 = vmatpush1.msra.mxu0 %v924
        %947 = vmatprep.subr.mxu0 0.0
        %948 = vmatpush1.msra.mxu0 %v923
        %949 = vmatprep.subr.mxu0 0.0
        %950 = vmatpush1.msra.mxu0 %v922
        %951 = vmatprep.subr.mxu0 0.0
        %952 = vmatpush1.msra.mxu0 %v921
        %953 = vmatprep.subr.mxu0 0.0
        %954 = vmatpush1.msra.mxu0 %v920
        %955 = vmatprep.subr.mxu0 0.0
        %956 = vmatpush1.msra.mxu0 %v919
        %957 = vmatprep.subr.mxu0 0.0
        %958 = vmatpush1.msra.mxu0 %v918
        %959 = vmatprep.subr.mxu0 0.0
        %960 = vmatpush1.msra.mxu0 %v917
        %961 = vmatprep.subr.mxu0 0.0
        %962 = vmatpush1.msra.mxu0 %v916
        %963 = vmatprep.subr.mxu0 0.0
        %964 = vmatpush1.msra.mxu0 %v915
        %965 = vmatprep.subr.mxu0 0.0
        %966 = vmatpush1.msra.mxu0 %v914
        %967 = vmatprep.subr.mxu0 0.0
        %968 = vmatpush1.msra.mxu0 %v913
        %969 = vmatprep.subr.mxu0 0.0
        %970 = vmatpush1.msra.mxu0 %v912
        %971 = vmatprep.subr.mxu0 0.0
        %972 = vmatpush2.msra.mxu0 0.0
        %973 = vmatprep.subr.mxu0 0.0
        %974 = vmatpush2.msra.mxu0 0.0
        %975 = vmatprep.subr.mxu0 0.0
        %976 = vmatpush2.msra.mxu0 0.0
        %977 = vmatprep.subr.mxu0 0.0
        %978 = vmatpush2.msra.mxu0 0.0
        %979 = vmatprep.subr.mxu0 0.0
        %980 = vmatpush2.msra.mxu0 0.0
        %981 = vmatprep.subr.mxu0 0.0
        %982 = vmatpush2.msra.mxu0 0.0
        %983 = vmatprep.subr.mxu0 0.0
        %984 = vmatpush2.msra.mxu0 0.0
        %985 = vmatprep.subr.mxu0 0.0
        %986 = vmatpush2.msra.mxu0 0.0
        %987 = vmatprep.subr.mxu0 0.0
        %988 = vmatpush2.msra.mxu0 %v935
        %989 = vmatprep.subr.mxu0 0.0
        %990 = vmatpush2.msra.mxu0 %v934
        %991 = vmatprep.subr.mxu0 0.0
        %992 = vmatpush2.msra.mxu0 %v933
        %993 = vmatprep.subr.mxu0 0.0
        %994 = vmatpush2.msra.mxu0 %v932
        %995 = vmatprep.subr.mxu0 0.0
        %996 = vmatpush2.msra.mxu0 %v931
        %997 = vmatprep.subr.mxu0 0.0
        %998 = vmatpush2.msra.mxu0 %v930
        %999 = vmatprep.subr.mxu0 0.0
        %1000 = vmatpush2.msra.mxu0 %v929
        %1001 = vmatprep.subr.mxu0 0.0
        %1002 = vmatpush2.msra.mxu0 %v928
        %1003 = vmatprep.mubr.f32.mxu0 %v937
        %1004 = vmatmul.mubr.f32.gmra.mxu0 %v909
        %v1005 = vpop.f32.mrf.mxu0
        %v1006 = vadd.f32 0.0, %v1005
        %v1007 = vpop.f32.mrf.mxu0
        %1008 = vdwg.mxu0
        %v1010 = vlaneseq
        %v1011 = vshrl.u32 %v1010, 7
        %v1012 = vsub.s32 0, %v1011
        %v1013 = vrot.slane %v911, %v1012
        %v1015 = vadd.f32 %v1013, %v1006
        %s1016 = scalar_lea.vmem %s13, 192
        %v1017 = vld [vmem:[%s1016] sm:$0xff]
        %v1018 = vld [vmem:[%s1016 + $0x8] sm:$0xff]
        %v1019 = vld [vmem:[%s1016 + $0x10] sm:$0xff]
        %v1020 = vld [vmem:[%s1016 + $0x18] sm:$0xff]
        %v1021 = vld [vmem:[%s1016 + $0x20] sm:$0xff]
        %v1022 = vld [vmem:[%s1016 + $0x28] sm:$0xff]
        %v1023 = vld [vmem:[%s1016 + $0x30] sm:$0xff]
        %v1024 = vld [vmem:[%s1016 + $0x38] sm:$0xff]
        %v1025 = vld [vmem:[%s1016 + $0x40] sm:$0xff]
        %v1026 = vld [vmem:[%s1016 + $0x48] sm:$0xff]
        %v1027 = vld [vmem:[%s1016 + $0x50] sm:$0xff]
        %v1028 = vld [vmem:[%s1016 + $0x58] sm:$0xff]
        %v1029 = vld [vmem:[%s1016 + $0x60] sm:$0xff]
        %v1030 = vld [vmem:[%s1016 + $0x68] sm:$0xff]
        %v1031 = vld [vmem:[%s1016 + $0x70] sm:$0xff]
        %v1032 = vld [vmem:[%s1016 + $0x78] sm:$0xff]
        %v1033 = vld [vmem:[%s1016 + $0x80] sm:$0xff]
        %v1034 = vld [vmem:[%s1016 + $0x88] sm:$0xff]
        %v1035 = vld [vmem:[%s1016 + $0x90] sm:$0xff]
        %v1036 = vld [vmem:[%s1016 + $0x98] sm:$0xff]
        %v1037 = vld [vmem:[%s1016 + $0xa0] sm:$0xff]
        %v1038 = vld [vmem:[%s1016 + $0xa8] sm:$0xff]
        %v1039 = vld [vmem:[%s1016 + $0xb0] sm:$0xff]
        %v1040 = vld [vmem:[%s1016 + $0xb8] sm:$0xff]
        %v1042 = vrot.slane %v909, 4
        %v1043 = vrot.slane %v910, 4
        %v1045 = vsel %vm687, %v1043, 0
        %1047 = vmatprep.subr.mxu0 0.0
        %1048 = vmatpush1.msra.mxu0 %v1032
        %1049 = vmatprep.subr.mxu0 0.0
        %1050 = vmatpush1.msra.mxu0 %v1031
        %1051 = vmatprep.subr.mxu0 0.0
        %1052 = vmatpush1.msra.mxu0 %v1030
        %1053 = vmatprep.subr.mxu0 0.0
        %1054 = vmatpush1.msra.mxu0 %v1029
        %1055 = vmatprep.subr.mxu0 0.0
        %1056 = vmatpush1.msra.mxu0 %v1028
        %1057 = vmatprep.subr.mxu0 0.0
        %1058 = vmatpush1.msra.mxu0 %v1027
        %1059 = vmatprep.subr.mxu0 0.0
        %1060 = vmatpush1.msra.mxu0 %v1026
        %1061 = vmatprep.subr.mxu0 0.0
        %1062 = vmatpush1.msra.mxu0 %v1025
        %1063 = vmatprep.subr.mxu0 0.0
        %1064 = vmatpush1.msra.mxu0 %v1024
        %1065 = vmatprep.subr.mxu0 0.0
        %1066 = vmatpush1.msra.mxu0 %v1023
        %1067 = vmatprep.subr.mxu0 0.0
        %1068 = vmatpush1.msra.mxu0 %v1022
        %1069 = vmatprep.subr.mxu0 0.0
        %1070 = vmatpush1.msra.mxu0 %v1021
        %1071 = vmatprep.subr.mxu0 0.0
        %1072 = vmatpush1.msra.mxu0 %v1020
        %1073 = vmatprep.subr.mxu0 0.0
        %1074 = vmatpush1.msra.mxu0 %v1019
        %1075 = vmatprep.subr.mxu0 0.0
        %1076 = vmatpush1.msra.mxu0 %v1018
        %1077 = vmatprep.subr.mxu0 0.0
        %1078 = vmatpush1.msra.mxu0 %v1017
        %1079 = vmatprep.subr.mxu0 0.0
        %1080 = vmatpush2.msra.mxu0 0.0
        %1081 = vmatprep.subr.mxu0 0.0
        %1082 = vmatpush2.msra.mxu0 0.0
        %1083 = vmatprep.subr.mxu0 0.0
        %1084 = vmatpush2.msra.mxu0 0.0
        %1085 = vmatprep.subr.mxu0 0.0
        %1086 = vmatpush2.msra.mxu0 0.0
        %1087 = vmatprep.subr.mxu0 0.0
        %1088 = vmatpush2.msra.mxu0 0.0
        %1089 = vmatprep.subr.mxu0 0.0
        %1090 = vmatpush2.msra.mxu0 0.0
        %1091 = vmatprep.subr.mxu0 0.0
        %1092 = vmatpush2.msra.mxu0 0.0
        %1093 = vmatprep.subr.mxu0 0.0
        %1094 = vmatpush2.msra.mxu0 0.0
        %1095 = vmatprep.subr.mxu0 0.0
        %1096 = vmatpush2.msra.mxu0 %v1040
        %1097 = vmatprep.subr.mxu0 0.0
        %1098 = vmatpush2.msra.mxu0 %v1039
        %1099 = vmatprep.subr.mxu0 0.0
        %1100 = vmatpush2.msra.mxu0 %v1038
        %1101 = vmatprep.subr.mxu0 0.0
        %1102 = vmatpush2.msra.mxu0 %v1037
        %1103 = vmatprep.subr.mxu0 0.0
        %1104 = vmatpush2.msra.mxu0 %v1036
        %1105 = vmatprep.subr.mxu0 0.0
        %1106 = vmatpush2.msra.mxu0 %v1035
        %1107 = vmatprep.subr.mxu0 0.0
        %1108 = vmatpush2.msra.mxu0 %v1034
        %1109 = vmatprep.subr.mxu0 0.0
        %1110 = vmatpush2.msra.mxu0 %v1033
        %1111 = vmatprep.mubr.f32.mxu0 %v1045
        %1112 = vmatmul.mubr.f32.gmra.mxu0 %v1042
        %v1113 = vpop.f32.mrf.mxu0
        %v1114 = vadd.f32 0.0, %v1113
        %v1115 = vpop.f32.mrf.mxu0
        %1116 = vdwg.mxu0
        %v1117 = vadd.f32 %v1015, %v1114
        %vm1118 = vcmask 1043456
        %v1119 = vsel %vm1118, %v1117, -inf
        %1120 = vmax.xlane.f32.xlu0 %v1119
        %v1121 = vpop.xlane.xlu0 %1120
        %v1122 = vsub.f32 %v1117, %v1121
        %v1123 = vmul.f32 %v1122, 1.442695
        %v1124 = vpow.pop %v1123
        %v1125 = vsel %vm1118, %v1124, 0.0
        %1126 = vadd.xlane.f32.xlu0 %v1125
        %v1127 = vpop.xlane.xlu0 %1126
        %v1128 = vrcp.pop %v1127
        %v1129 = vmul.f32 %v1124, %v1128
        %1130 = vst [vmem:[%s485] sm:$0xf] %v1129
        %s1131 = sand.u32 %s357, 1
        %s1132 = scalar_lea.sflag [#allocation3], %s1131
        %s1133 = sand.u32 %s357, 1
        %s1134 = smul.addr %s1133, 4
        %s1135 = scalar_lea.vmem [#allocation2], %s1134
        // Predicated region
        $region81: #{predictor_forward.1} parent=79 // pred_check
          %p1136 = pneg %p367
        $region82: #{predictor_forward.1} parent=79 // pred_check_branch
          %1138 = sbr.rel (%p1136) target = $region84
        $region83: #{predictor_forward.1} parent=79 // pred_region
          %s1140 = ssub.s32 64, 64
          %1141 = vsyncadd %s1132, %s1140
          %s1142 = smul.addr %s29, 64
          %s1143 = scalar_lea.hbm %s15, %s1142
          %s1145 = sshll.u32 %s1135, 4
          %s1146 = int_to_ptr.vmem [resolvable:$true] %s1145
          %1148 = dma.vmem_to_hbm [thread:$0]  %s1146, 64, %s1143, %s1132
        $region84: #{predictor_forward.1} parent=79 // pred_fallthru
          _
      $region80: #{predictor_forward.1} parent=5 // pred_fallthru
        _
      %p1149 = scmp.le.s32.totalorder 2, %s24
      // Predicated region
      $region85: #{predictor_forward.1} parent=5 // pred_check
        %p1150 = pneg %p1149
      $region86: #{predictor_forward.1} parent=5 // pred_check_branch
        %1152 = sbr.rel (%p1150) target = $region88
      $region87: #{predictor_forward.1} parent=5 // pred_region
        %s1153 = ssub.s32 %s24, 2
        // Predicated region
        $region89: #{predictor_forward.1} parent=87 // pred_check
          %p1154 = pneg %p373
        $region90: #{predictor_forward.1} parent=87 // pred_check_branch
          %1156 = sbr.rel (%p1154) target = $region92
        $region91: #{predictor_forward.1} parent=87 // pred_region
          %s1157 = sand.u32 %s358, 1
          %s1158 = scalar_lea.sflag [#allocation3], %s1157
          %s1159 = sand.u32 %s358, 1
          %s1160 = smul.addr %s1159, 4
          %s1161 = scalar_lea.vmem [#allocation2], %s1160
          %1162 = dma.done %s1158, 64
        $region92: #{predictor_forward.1} parent=87 // pred_fallthru
          _
      $region88: #{predictor_forward.1} parent=5 // pred_fallthru
        _
    $region6: #{predictor_forward.1} parent=1 // loop_footer
      %s28 = sadd.s32 1, %s24
    $region7: #{predictor_forward.1} parent=1 // loop_footer_branch
      %23 = sbr.rel target = $region3
    $region8: #{predictor_forward.1} parent=1 // loop_exit
      _
    %1163 = vsyncpa [#allocation3], 1
    %s1164 = scalar_lea.sflag [#allocation3], 1
    %1165 = vsyncpa %s1164, 1

</llo_original>
